<compile_context>
chip_gen: v5e
topology: v5e:2x2
jax: 0.10.0
libtpu: 0.0.40
codegen_flags: <defaults>
</compile_context>

<pallas_src>
import functools

import jax
import jax.numpy as jnp
from jax import lax
from jax.experimental import pallas as pl
from jax.experimental.pallas import tpu as pltpu

KERNEL = 3  # max-pool kernel size from the module __init__


def _shift(x, s, axis, fill):
    """y[..., j, ...] = x[..., j - s, ...]; positions shifted in from outside get `fill`.

    Static shift -> lowers to a static slice + concatenate (well supported)."""
    n = x.shape[axis]
    pad_shape = list(x.shape)
    pad_shape[axis] = abs(s)
    filler = jnp.full(pad_shape, fill, dtype=x.dtype)
    if s > 0:
        body = lax.slice_in_dim(x, 0, n - s, axis=axis)
        return lax.concatenate([filler, body], dimension=axis)
    body = lax.slice_in_dim(x, -s, n, axis=axis)
    return lax.concatenate([body, filler], dimension=axis)


def _nms_kernel(x_ref, o_ref, *, pad, h, w):
    """Block = (TB*h, G*w): TB plane-groups, G planes packed along lanes."""
    x = x_ref[...]                                   # (TR, L)
    tr, tl = x.shape
    neg = jnp.array(-jnp.inf, dtype=x.dtype)

    # Hoisted per-plane coordinates (built once, reused by every shifted max).
    row_in = lax.broadcasted_iota(jnp.int32, (tr, tl), 0) % h
    col_in = lax.broadcasted_iota(jnp.int32, (tr, tl), 1) % w

    # Separable max: lane (W) direction first ...
    m = x
    for s in range(1, pad + 1):
        left = _shift(x, s, axis=1, fill=neg)        # value x[i, j - s]
        m = jnp.maximum(m, jnp.where(col_in >= s, left, neg))
        right = _shift(x, -s, axis=1, fill=neg)      # value x[i, j + s]
        m = jnp.maximum(m, jnp.where(col_in < w - s, right, neg))

    # ... then sublane (H) direction on the row-pooled result.
    mm = m
    for s in range(1, pad + 1):
        up = _shift(m, s, axis=0, fill=neg)          # value m[i - s, j]
        mm = jnp.maximum(mm, jnp.where(row_in >= s, up, neg))
        down = _shift(m, -s, axis=0, fill=neg)       # value m[i + s, j]
        mm = jnp.maximum(mm, jnp.where(row_in < h - s, down, neg))

    # Fused keep-mask + multiply.
    o_ref[...] = jnp.where(mm == x, x, jnp.zeros_like(x))


def _pick_lane_pack(num_planes, w, max_lanes=1024):
    """Planes to pack side-by-side along lanes (lane-dense loads/stores)."""
    if w >= 128:
        return 1
    divisors = [g for g in range(1, num_planes + 1) if num_planes % g == 0]
    for g in divisors:                       # smallest divisor reaching 128 lanes
        if 128 <= g * w <= max_lanes:
            return g
    best = 1
    for g in divisors:                       # else widest that stays within cap
        if g * w <= max_lanes:
            best = g
    return best


def _pick_row_block(num_groups, h, lanes, itemsize, target_bytes=2 * 1024 * 1024):
    """Plane-groups per grid step: largest divisor whose block fits ~target_bytes
    and whose sublane extent is 8-aligned (or equals the full array)."""
    divisors = [d for d in range(1, num_groups + 1) if num_groups % d == 0]
    aligned = [d for d in divisors if (d * h) % 8 == 0] or [num_groups]
    fitting = [d for d in aligned if d * h * lanes * itemsize <= target_bytes]
    return max(fitting) if fitting else min(aligned)


def centernet_pooling_nms(x, kernel=KERNEL):
    """x: (N, C, H, W) float heatmap. Returns x * (maxpool_kxk_s1(x) == x)."""
    if kernel % 2 != 1:
        raise ValueError("only odd max-pool kernel sizes are supported")
    if not jnp.issubdtype(x.dtype, jnp.floating):
        raise ValueError("expects a floating-point heatmap")
    pad = (kernel - 1) // 2
    n, c, h, w = x.shape
    p = n * c

    g = _pick_lane_pack(p, w)                # planes packed along lanes
    pg = p // g                              # plane-groups stacked along sublanes
    lanes = g * w

    # (N,C,H,W) -> (Pg, G, H, W) -> (Pg, H, G, W) -> lane-dense 2-D slab (Pg*H, G*W)
    x2 = x.reshape(pg, g, h, w).transpose(0, 2, 1, 3).reshape(pg * h, lanes)

    tb = _pick_row_block(pg, h, lanes, x.dtype.itemsize)
    tr = tb * h
    grid = (pg // tb,)

    out2 = pl.pallas_call(
        functools.partial(_nms_kernel, pad=pad, h=h, w=w),
        out_shape=jax.ShapeDtypeStruct((pg * h, lanes), x.dtype),
        grid_spec=pltpu.PrefetchScalarGridSpec(
            num_scalar_prefetch=0,
            grid=grid,
            in_specs=[pl.BlockSpec((tr, lanes), lambda i: (i, 0))],
            out_specs=pl.BlockSpec((tr, lanes), lambda i: (i, 0)),
        ),
        compiler_params=pltpu.CompilerParams(
            dimension_semantics=("parallel",),
            vmem_limit_bytes=32 * 1024 * 1024,
        ),
        cost_estimate=pl.CostEstimate(
            flops=int(20 * pad) * x.size,
            transcendentals=0,
            bytes_accessed=2 * x.size * x.dtype.itemsize,
        ),
    )(x2)

    # Undo the lane/sublane packing.
    return out2.reshape(pg, h, g, w).transpose(0, 2, 1, 3).reshape(n, c, h, w)


def _reference(x, kernel=KERNEL):
    """Pure-JAX reference (== PyTorch MaxPool2d(k, stride=1, pad=(k-1)//2) NMS)."""
    pad = (kernel - 1) // 2
    xmax = lax.reduce_window(
        x, -jnp.inf, lax.max,
        window_dimensions=(1, 1, kernel, kernel),
        window_strides=(1, 1, 1, 1),
        padding=((0, 0), (0, 0), (pad, pad), (pad, pad)),
    )
    keep = (xmax == x).astype(x.dtype)
    return x * keep


if __name__ == "__main__":
    key = jax.random.PRNGKey(0)
    # heatmap-like input: batch=2, num_classes=4, spatial 16x16
    x = jax.random.uniform(key, (2, 4, 16, 16), dtype=jnp.float32)

    out = centernet_pooling_nms(x)
    out = jax.block_until_ready(out)

    ref = _reference(x)
    assert out.shape == ref.shape and out.dtype == ref.dtype
    assert jnp.allclose(out, ref), "Pallas kernel mismatch vs reference"

    print("KERNEL_OK")
</pallas_src>

<mosaic_0001>
module attributes {stable_mosaic.version = 11 : i64} {
  func.func @_nms_kernel(%arg0: i32, %arg1: memref<16x128xf32, #tpu.memory_space<vmem>>, %arg2: memref<16x128xf32, #tpu.memory_space<vmem>>) attributes {dimension_semantics = [#tpu.dimension_semantics<parallel>], iteration_bounds = array<i64: 1>, scalar_prefetch = 0 : i64, scratch_operands = 0 : i64, tpu.core_type = #tpu.core_type<tc>, window_params = [{transform_indices = @transform_0, window_bounds = array<i64: 16, 128>}, {transform_indices = @transform_1, window_bounds = array<i64: 16, 128>}]} {
    %c0 = arith.constant 0 : index
    %c0_0 = arith.constant 0 : index
    %0 = vector.load %arg1[%c0, %c0_0] : memref<16x128xf32, #tpu.memory_space<vmem>>, vector<16x128xf32>
    %1 = tpu.iota {dimensions = array<i32: 0>} : vector<16x128xi32>
    %c16_i32 = arith.constant 16 : i32
    %c0_i32 = arith.constant 0 : i32
    %2 = arith.cmpi eq, %c16_i32, %c0_i32 : i32
    %c1_i32 = arith.constant 1 : i32
    %3 = arith.select %2, %c1_i32, %c16_i32 : i32
    %4 = vector.broadcast %3 : i32 to vector<16x128xi32>
    %5 = arith.remsi %1, %4 : vector<16x128xi32>
    %c0_i32_1 = arith.constant 0 : i32
    %6 = vector.broadcast %c0_i32_1 : i32 to vector<16x128xi32>
    %7 = arith.cmpi ne, %5, %6 : vector<16x128xi32>
    %c0_i32_2 = arith.constant 0 : i32
    %8 = vector.broadcast %c0_i32_2 : i32 to vector<16x128xi32>
    %9 = arith.cmpi slt, %5, %8 : vector<16x128xi32>
    %c0_i32_3 = arith.constant 0 : i32
    %10 = arith.cmpi slt, %3, %c0_i32_3 : i32
    %11 = vector.broadcast %10 : i1 to vector<16x128xi1>
    %12 = vector.broadcast %11 : vector<16x128xi1> to vector<16x128xi1>
    %13 = arith.xori %9, %12 : vector<16x128xi1>
    %14 = arith.andi %13, %7 : vector<16x128xi1>
    %15 = vector.broadcast %3 : i32 to vector<16x128xi32>
    %16 = arith.addi %5, %15 : vector<16x128xi32>
    %17 = arith.select %14, %16, %5 : vector<16x128xi1>, vector<16x128xi32>
    %18 = tpu.iota {dimensions = array<i32: 1>} : vector<16x128xi32>
    %c16_i32_4 = arith.constant 16 : i32
    %c0_i32_5 = arith.constant 0 : i32
    %19 = arith.cmpi eq, %c16_i32_4, %c0_i32_5 : i32
    %c1_i32_6 = arith.constant 1 : i32
    %20 = arith.select %19, %c1_i32_6, %c16_i32_4 : i32
    %21 = vector.broadcast %20 : i32 to vector<16x128xi32>
    %22 = arith.remsi %18, %21 : vector<16x128xi32>
    %c0_i32_7 = arith.constant 0 : i32
    %23 = vector.broadcast %c0_i32_7 : i32 to vector<16x128xi32>
    %24 = arith.cmpi ne, %22, %23 : vector<16x128xi32>
    %c0_i32_8 = arith.constant 0 : i32
    %25 = vector.broadcast %c0_i32_8 : i32 to vector<16x128xi32>
    %26 = arith.cmpi slt, %22, %25 : vector<16x128xi32>
    %c0_i32_9 = arith.constant 0 : i32
    %27 = arith.cmpi slt, %20, %c0_i32_9 : i32
    %28 = vector.broadcast %27 : i1 to vector<16x128xi1>
    %29 = vector.broadcast %28 : vector<16x128xi1> to vector<16x128xi1>
    %30 = arith.xori %26, %29 : vector<16x128xi1>
    %31 = arith.andi %30, %24 : vector<16x128xi1>
    %32 = vector.broadcast %20 : i32 to vector<16x128xi32>
    %33 = arith.addi %22, %32 : vector<16x128xi32>
    %34 = arith.select %31, %33, %22 : vector<16x128xi1>, vector<16x128xi32>
    %cst = arith.constant 0xFF800000 : f32
    %35 = vector.broadcast %cst : f32 to vector<16x1xf32>
    %36 = vector.extract_strided_slice %0 {offsets = [0, 0], sizes = [16, 127], strides = [1, 1]} : vector<16x128xf32> to vector<16x127xf32>
    %37 = tpu.concatenate %35, %36 in 1 : vector<16x1xf32>, vector<16x127xf32> -> vector<16x128xf32>
    %c1_i32_10 = arith.constant 1 : i32
    %38 = vector.broadcast %c1_i32_10 : i32 to vector<16x128xi32>
    %39 = arith.cmpi sge, %34, %38 : vector<16x128xi32>
    %cst_11 = arith.constant 0xFF800000 : f32
    %40 = vector.broadcast %cst_11 : f32 to vector<16x128xf32>
    %41 = arith.select %39, %37, %40 : vector<16x128xi1>, vector<16x128xf32>
    %42 = arith.maximumf %0, %41 : vector<16x128xf32>
    %cst_12 = arith.constant 0xFF800000 : f32
    %43 = vector.broadcast %cst_12 : f32 to vector<16x1xf32>
    %44 = vector.extract_strided_slice %0 {offsets = [0, 1], sizes = [16, 127], strides = [1, 1]} : vector<16x128xf32> to vector<16x127xf32>
    %45 = tpu.concatenate %44, %43 in 1 : vector<16x127xf32>, vector<16x1xf32> -> vector<16x128xf32>
    %c15_i32 = arith.constant 15 : i32
    %46 = vector.broadcast %c15_i32 : i32 to vector<16x128xi32>
    %47 = arith.cmpi slt, %34, %46 : vector<16x128xi32>
    %cst_13 = arith.constant 0xFF800000 : f32
    %48 = vector.broadcast %cst_13 : f32 to vector<16x128xf32>
    %49 = arith.select %47, %45, %48 : vector<16x128xi1>, vector<16x128xf32>
    %50 = arith.maximumf %42, %49 : vector<16x128xf32>
    %cst_14 = arith.constant 0xFF800000 : f32
    %51 = vector.broadcast %cst_14 : f32 to vector<1x128xf32>
    %52 = vector.extract_strided_slice %50 {offsets = [0, 0], sizes = [15, 128], strides = [1, 1]} : vector<16x128xf32> to vector<15x128xf32>
    %53 = tpu.concatenate %51, %52 in 0 : vector<1x128xf32>, vector<15x128xf32> -> vector<16x128xf32>
    %c1_i32_15 = arith.constant 1 : i32
    %54 = vector.broadcast %c1_i32_15 : i32 to vector<16x128xi32>
    %55 = arith.cmpi sge, %17, %54 : vector<16x128xi32>
    %cst_16 = arith.constant 0xFF800000 : f32
    %56 = vector.broadcast %cst_16 : f32 to vector<16x128xf32>
    %57 = arith.select %55, %53, %56 : vector<16x128xi1>, vector<16x128xf32>
    %58 = arith.maximumf %50, %57 : vector<16x128xf32>
    %cst_17 = arith.constant 0xFF800000 : f32
    %59 = vector.broadcast %cst_17 : f32 to vector<1x128xf32>
    %60 = vector.extract_strided_slice %50 {offsets = [1, 0], sizes = [15, 128], strides = [1, 1]} : vector<16x128xf32> to vector<15x128xf32>
    %61 = tpu.concatenate %60, %59 in 0 : vector<15x128xf32>, vector<1x128xf32> -> vector<16x128xf32>
    %c15_i32_18 = arith.constant 15 : i32
    %62 = vector.broadcast %c15_i32_18 : i32 to vector<16x128xi32>
    %63 = arith.cmpi slt, %17, %62 : vector<16x128xi32>
    %cst_19 = arith.constant 0xFF800000 : f32
    %64 = vector.broadcast %cst_19 : f32 to vector<16x128xf32>
    %65 = arith.select %63, %61, %64 : vector<16x128xi1>, vector<16x128xf32>
    %66 = arith.maximumf %58, %65 : vector<16x128xf32>
    %67 = arith.cmpf oeq, %66, %0 : vector<16x128xf32>
    %cst_20 = arith.constant 0.000000e+00 : f32
    %68 = vector.broadcast %cst_20 : f32 to vector<16x128xf32>
    %69 = arith.select %67, %0, %68 : vector<16x128xi1>, vector<16x128xf32>
    %c0_21 = arith.constant 0 : index
    %c0_22 = arith.constant 0 : index
    %70 = vector.load %arg2[%c0_21, %c0_22] : memref<16x128xf32, #tpu.memory_space<vmem>>, vector<16x128xf32>
    tpu.vector_store %arg2[%c0_21, %c0_22], %69 {strides = array<i32>} : memref<16x128xf32, #tpu.memory_space<vmem>>, vector<16x128xf32>,
    return
  }
  func.func @transform_0(%arg0: i32) -> (i32, i32) {
    %c0_i32 = arith.constant 0 : i32
    %c0_i32_0 = arith.constant 0 : i32
    return %arg0, %c0_i32 : i32, i32
  }
  func.func @transform_1(%arg0: i32) -> (i32, i32) {
    %c0_i32 = arith.constant 0 : i32
    %c0_i32_0 = arith.constant 0 : i32
    return %arg0, %c0_i32 : i32, i32
  }
}

</mosaic_0001>

<llo_original>
// kernel: tpu_custom_call.1
$region0: #{tpu_custom_call.1}
  #allocation0 [shape = 'u32[]', space=smem, size = 0x4, offset = 0x4, fixed_abs, tag = 'smem constant byte address 0x4 - core index']
  #allocation1 [shape = 'u32[72,128]{1,0:T(1,128)}', space=vmem, size = 0x9000, scoped, tag = 'internal scratch']
  %s0 = inlined_call_operand.hbm [shape: f32[16,128], index: 0, kind: input, shape index: {}]
  %s1 = inlined_call_operand.hbm [shape: f32[16,128], index: 1, kind: output, shape index: {}]
  %s2 = sld [smem:[#allocation0]]
  $region18: #{tpu_custom_call.1} parent=0
    _
  %s4 = ssub.s32 1, %s2
  %s5 = scalar_select 0, %s4, %s2
  $region1: #{tpu_custom_call.1} parent=0
    #allocation2 [shape = 'u8[8192]{0}', space=vmem, size = 0x2000, scoped, tag = 'input window, operand 0, single buffered']
    #allocation3 [shape = 's32[1]{0}', space=sflag, size = 0x4, scoped, tag = 'scoped memory for tpu_custom_call.1']
    #allocation4 [shape = 's32[1]{0}', space=sflag, size = 0x4, scoped, tag = 'scoped memory for tpu_custom_call.1']
    #allocation5 [shape = 'u8[8192]{0}', space=vmem, size = 0x2000, scoped, tag = 'output window, operand 0, single buffered']
    %6 = vsyncpa [#allocation3], 0
    %7 = vsyncpa [#allocation4], 0
    // Predicated region
    $region2: #{tpu_custom_call.1} parent=1 // pred_check
      _
    $region3: #{tpu_custom_call.1} parent=1 // pred_check_branch
      %9 = sbr.rel (0) target = $region5
    $region4: #{tpu_custom_call.1} parent=1 // pred_region
      %11 = vsyncadd [#allocation3], 0
      %s12 = sshll.u32 %s0, 4
      %s13 = int_to_ptr.hbm [resolvable:$true] %s12
      %s14 = sshll.u32 [#allocation2], 4
      %s15 = int_to_ptr.vmem [resolvable:$true] %s14
      %20 = dma.hbm_to_vmem [thread:$0]  %s13, 256, %s15, [#allocation3], 128, 128, 8
    $region5: #{tpu_custom_call.1} parent=1 // pred_fallthru
      _
    // Predicated region
    $region6: #{tpu_custom_call.1} parent=1 // pred_check
      _
    $region7: #{tpu_custom_call.1} parent=1 // pred_check_branch
      %22 = sbr.rel (0) target = $region9
    $region8: #{tpu_custom_call.1} parent=1 // pred_region
      %24 = dma.done [#allocation3], 256
    $region9: #{tpu_custom_call.1} parent=1 // pred_fallthru
      _
    %v25 = vld [vmem:[#allocation2] sm:$0xff]
    %v26 = vld [vmem:[#allocation2 + $0x8] sm:$0xff]
    %v27 = vlaneseq
    %v28 = vshrl.u32 %v27, 7
    %v29 = vadd.s32 %v28, 8
    %vm30 = vcmp.lt.s32.totalorder %v28, 0
    %v31 = vsub.s32 0, %v28
    %v32 = vsel %vm30, %v31, %v28
    %v33 = vshrl.u32 %v32, 4
    %v34 = vand.u32 %v32, 15
    %v35 = vsub.s32 0, %v34
    %v36 = vsel %vm30, %v35, %v34
    %vm37 = vcmp.lt.s32.totalorder %v29, 0
    %v38 = vsub.s32 0, %v29
    %v39 = vsel %vm37, %v38, %v29
    %v40 = vshrl.u32 %v39, 4
    %v41 = vand.u32 %v39, 15
    %v42 = vsub.s32 0, %v41
    %v43 = vsel %vm37, %v42, %v41
    %vm44 = vcmp.ne.s32.totalorder %v36, 0
    %vm45 = vcmp.ne.s32.totalorder %v43, 0
    %vm46 = vcmp.lt.s32.totalorder %v36, 0
    %vm47 = vcmp.lt.s32.totalorder %v43, 0
    %vm48 = vmand %vm46, %vm44
    %vm49 = vmand %vm47, %vm45
    %v50 = vadd.s32 %v36, 16
    %v51 = vadd.s32 %v43, 16
    %v52 = vsel %vm48, %v50, %v36
    %v53 = vsel %vm49, %v51, %v43
    %v54 = vlaneseq
    %v55 = vand.u32 %v54, 127
    %vm56 = vcmp.lt.s32.totalorder %v55, 0
    %v57 = vsub.s32 0, %v55
    %v58 = vsel %vm56, %v57, %v55
    %v59 = vshrl.u32 %v58, 4
    %v60 = vand.u32 %v58, 15
    %v61 = vsub.s32 0, %v60
    %v62 = vsel %vm56, %v61, %v60
    %vm63 = vcmp.ne.s32.totalorder %v62, 0
    %vm64 = vcmp.lt.s32.totalorder %v62, 0
    %vm65 = vmand %vm64, %vm63
    %v66 = vadd.s32 %v62, 16
    %v67 = vsel %vm65, %v66, %v62
    %70 = vrot.lane.b32.xlu0 %v25, 1
    %v71 = vpop.permute.xlu0 %70
    %72 = vrot.lane.b32.xlu0 %v26, 1
    %v73 = vpop.permute.xlu0 %72
    %vm76 = vcmask 7168
    %v77 = vsel %vm76, -inf, %v71
    %v78 = vsel %vm76, -inf, %v73
    %vm79 = vcmp.ge.s32.totalorder %v67, 1
    %v80 = vsel %vm79, %v77, -inf
    %v81 = vsel %vm79, %v78, -inf
    %v82 = vmax.f32 %v25, %v80
    %v83 = vmax.f32 %v26, %v81
    %84 = vrot.lane.b32.xlu0 %v25, 127
    %v85 = vpop.permute.xlu0 %84
    %86 = vrot.lane.b32.xlu0 %v26, 127
    %v87 = vpop.permute.xlu0 %86
    %vm90 = vcmask 1039360
    %v91 = vsel %vm90, %v85, -inf
    %v92 = vsel %vm90, %v87, -inf
    %vm93 = vcmp.lt.s32.totalorder %v67, 15
    %v94 = vsel %vm93, %v91, -inf
    %v95 = vsel %vm93, %v92, -inf
    %v96 = vmax.f32 %v82, %v94
    %v97 = vmax.f32 %v83, %v95
    %vm100 = vcmask 1040384
    %v101 = vrot.slane %v96, 7
    %v102 = vrot.slane %v97, 7
    %v103 = vsel %vm100, %v101, %v102
    %v106 = vsel %vm100, -inf, %v101
    %vm107 = vcmp.ge.s32.totalorder %v52, 1
    %vm108 = vcmp.ge.s32.totalorder %v53, 1
    %v109 = vsel %vm107, %v106, -inf
    %v110 = vsel %vm108, %v103, -inf
    %v111 = vmax.f32 %v96, %v109
    %v112 = vmax.f32 %v97, %v110
    %vm113 = vcmask 1046528
    %v114 = vrot.slane %v96, 1
    %v115 = vrot.slane %v97, 1
    %v116 = vsel %vm113, %v114, %v115
    %v119 = vsel %vm113, %v115, -inf
    %vm120 = vcmp.lt.s32.totalorder %v52, 15
    %vm121 = vcmp.lt.s32.totalorder %v53, 15
    %v122 = vsel %vm120, %v116, -inf
    %v123 = vsel %vm121, %v119, -inf
    %v124 = vmax.f32 %v111, %v122
    %v125 = vmax.f32 %v112, %v123
    %vm126 = vcmp.eq.f32.partialorder %v124, %v25
    %vm127 = vcmp.eq.f32.partialorder %v125, %v26
    %v128 = vsel %vm126, %v25, 0.0
    %v129 = vsel %vm127, %v26, 0.0
    %130 = vst [vmem:[#allocation5] sm:$0xff] %v128
    %131 = vst [vmem:[#allocation5 + $0x8] sm:$0xff] %v129
    // Predicated region
    $region10: #{tpu_custom_call.1} parent=1 // pred_check
      _
    $region11: #{tpu_custom_call.1} parent=1 // pred_check_branch
      %133 = sbr.rel (0) target = $region13
    $region12: #{tpu_custom_call.1} parent=1 // pred_region
      %135 = vsyncadd [#allocation4], 0
      %s136 = sshll.u32 [#allocation5], 4
      %s137 = int_to_ptr.vmem [resolvable:$true] %s136
      %s138 = sshll.u32 %s1, 4
      %s139 = int_to_ptr.hbm [resolvable:$true] %s138
      %144 = dma.vmem_to_hbm [thread:$0]  %s137, 256, %s139, [#allocation4], 128, 128, 8
    $region13: #{tpu_custom_call.1} parent=1 // pred_fallthru
      _
    // Predicated region
    $region14: #{tpu_custom_call.1} parent=1 // pred_check
      _
    $region15: #{tpu_custom_call.1} parent=1 // pred_check_branch
      %146 = sbr.rel (0) target = $region17
    $region16: #{tpu_custom_call.1} parent=1 // pred_region
      %148 = dma.done [#allocation4], 256
    $region17: #{tpu_custom_call.1} parent=1 // pred_fallthru
      _
    %149 = vsyncpa [#allocation3], 1
    %150 = vsyncpa [#allocation4], 1

</llo_original>
